<compile_context>
chip_gen: v6e
topology: v6e:2x2x1
jax: 0.10.0
libtpu: 0.0.40
codegen_flags: <defaults>
</compile_context>

<pallas_src>
import functools

import jax
import jax.numpy as jnp
import numpy as np
from jax.experimental import pallas as pl
from jax.experimental.pallas import tpu as pltpu

LOG_STD_MAX = 2.0
LOG_STD_MIN = -5.0


def _round_up(x, m):
    return (x + m - 1) // m * m


def _batch_tiling(B):
    """(padded batch, batch tile): >=16 rows (bf16 sublane packing); one tile
    for small batches; 256-row MXU-aligned tiles for large batches so padding
    is bounded by one tile and v7x gets >=2 'parallel' grid steps."""
    Bp = _round_up(max(B, 16), 16)
    if Bp <= 512:
        return Bp, Bp
    bm = 256
    return _round_up(Bp, bm), bm


def actor_parallel_kernel(obs_ref, h_ref, w_ref, b_ref, newh_ref, tail_ref,
                          x_scr, *, obs_pad, hidden_pad):
    """Masked linear (mask pre-folded) with ReLU on the hidden columns.

    obs_ref  : (bm, OBSp)  bf16 padded observations
    h_ref    : (bm, Hp)    bf16 padded previous hidden activations (carry)
    w_ref    : (Kp, OUTp)  bf16 pre-masked stacked weight (obs rows | hidden rows)
    b_ref    : (1,  OUTp)  f32 bias, column layout [hidden | pad | tail | pad]
    newh_ref : (bm, Hp)    bf16 out: ReLU'd new hidden activations
    tail_ref : (bm, Tp)    f32 out: raw [new_mean, new_log_std]
    x_scr    : (bm, Kp)    bf16 scratch used to fuse the two inputs into one
                           K=256 MXU push (static, 128-lane-aligned stores).
    """
    x_scr[:, :obs_pad] = obs_ref[...]
    x_scr[:, obs_pad:] = h_ref[...]
    y = jnp.dot(x_scr[...], w_ref[...], preferred_element_type=jnp.float32)
    y = y + b_ref[...]
    # Static 128-lane-aligned column split; ReLU only on the hidden region.
    newh_ref[...] = jnp.maximum(y[:, :hidden_pad], 0.0).astype(newh_ref.dtype)
    tail_ref[...] = y[:, hidden_pad:]


def prepare_params(weight, bias, mask, obs_dim, hidden_total, action_dim):
    """One-time host-side prep: fold mask into weight, transpose, split output
    columns (hidden vs mean/log_std), stack obs/hidden input rows into a single
    lane-padded matrix, cast weights to bf16."""
    output_dim, input_dim = weight.shape
    tail = 2 * action_dim
    assert input_dim == obs_dim + hidden_total
    assert output_dim == hidden_total + tail

    wm = (jnp.asarray(weight) * jnp.asarray(mask)).T.astype(jnp.float32)  # (in, out)

    OBSp = _round_up(obs_dim, 128)
    Hp = _round_up(hidden_total, 128)
    Tp = _round_up(tail, 128)
    Kp = OBSp + Hp
    OUTp = Hp + Tp

    w = jnp.zeros((Kp, OUTp), jnp.float32)
    w = w.at[:obs_dim, :hidden_total].set(wm[:obs_dim, :hidden_total])
    w = w.at[:obs_dim, Hp:Hp + tail].set(wm[:obs_dim, hidden_total:])
    w = w.at[OBSp:OBSp + hidden_total, :hidden_total].set(wm[obs_dim:, :hidden_total])
    w = w.at[OBSp:OBSp + hidden_total, Hp:Hp + tail].set(wm[obs_dim:, hidden_total:])

    b_p = jnp.zeros((1, OUTp), jnp.float32)
    b_p = b_p.at[0, :hidden_total].set(jnp.asarray(bias)[:hidden_total])
    b_p = b_p.at[0, Hp:Hp + tail].set(jnp.asarray(bias)[hidden_total:])

    return dict(w=w.astype(jnp.bfloat16), bias=b_p,
                obs_dim=obs_dim, hidden_total=hidden_total, action_dim=action_dim,
                OBSp=OBSp, Hp=Hp, Tp=Tp, Kp=Kp, OUTp=OUTp)


def init_padded_activations(B, prep):
    """Zero carry in kernel layout (matches ActorSlowInParallel.get_activations)."""
    Bp, _ = _batch_tiling(B)
    return (jnp.zeros((Bp, prep["Hp"]), jnp.bfloat16),
            jnp.zeros((Bp, prep["Tp"]), jnp.float32))


def pad_activations(hidden_activations, B, prep):
    """Logical [(B,H), ((B,A),(B,A))] carry -> padded kernel layout."""
    Bp, _ = _batch_tiling(B)
    h_prev = hidden_activations[0]
    old_mean, old_log_std = hidden_activations[-1]
    A, H = prep["action_dim"], prep["hidden_total"]
    h_pad = jnp.zeros((Bp, prep["Hp"]), jnp.bfloat16).at[:B, :H].set(
        h_prev.astype(jnp.bfloat16))
    tail_pad = (jnp.zeros((Bp, prep["Tp"]), jnp.float32)
                .at[:B, :A].set(old_mean.astype(jnp.float32))
                .at[:B, A:2 * A].set(old_log_std.astype(jnp.float32)))
    return h_pad, tail_pad


def unpack_padded_activations(carry, B, prep):
    """Padded carry -> logical shapes (only call when a consumer needs them)."""
    h_pad, tail_pad = carry
    A, H = prep["action_dim"], prep["hidden_total"]
    new_hidden = h_pad[:B, :H].astype(jnp.float32)
    new_mean = tail_pad[:B, :A]
    new_log_std = tail_pad[:B, A:2 * A]
    return new_hidden, (new_mean, new_log_std)


def forward_padded(obs, carry, prep):
    """One ActorSlowInParallel step with the recurrent carry kept in the
    padded kernel layout.  Returns (mean, log_std, new_carry)."""
    h_pad, tail_pad = carry
    obs_dim, A = prep["obs_dim"], prep["action_dim"]
    OBSp, Hp, Tp, Kp, OUTp = (prep["OBSp"], prep["Hp"], prep["Tp"],
                              prep["Kp"], prep["OUTp"])

    B = obs.shape[0]
    Bp, bm = _batch_tiling(B)
    assert h_pad.shape == (Bp, Hp) and tail_pad.shape == (Bp, Tp)
    grid = (Bp // bm,)

    # Only obs arrives in logical shape -> the one per-call pad.
    obs_p = jnp.zeros((Bp, OBSp), jnp.bfloat16).at[:B, :obs_dim].set(
        obs.astype(jnp.bfloat16))

    kernel = functools.partial(actor_parallel_kernel, obs_pad=OBSp, hidden_pad=Hp)

    bytes_accessed = (Bp * OBSp * 2 + Bp * Hp * 2          # obs + hidden in (bf16)
                      + Kp * OUTp * 2 + OUTp * 4           # weight (bf16) + bias (f32)
                      + Bp * Hp * 2 + Bp * Tp * 4)         # newh (bf16) + tail (f32)
    cost = pl.CostEstimate(flops=2 * Bp * Kp * OUTp, transcendentals=0,
                           bytes_accessed=bytes_accessed)

    newh_pad, new_tail_pad = pl.pallas_call(
        kernel,
        out_shape=(jax.ShapeDtypeStruct((Bp, Hp), jnp.bfloat16),
                   jax.ShapeDtypeStruct((Bp, Tp), jnp.float32)),
        grid=grid,
        in_specs=[
            pl.BlockSpec((bm, OBSp), lambda i: (i, 0)),     # obs tile
            pl.BlockSpec((bm, Hp), lambda i: (i, 0)),       # hidden carry tile
            # Constant index_map -> weight/bias stay resident across batch tiles.
            pl.BlockSpec((Kp, OUTp), lambda i: (0, 0)),
            pl.BlockSpec((1, OUTp), lambda i: (0, 0)),
        ],
        out_specs=(
            pl.BlockSpec((bm, Hp), lambda i: (i, 0)),
            pl.BlockSpec((bm, Tp), lambda i: (i, 0)),
        ),
        scratch_shapes=[pltpu.VMEM((bm, Kp), jnp.bfloat16)],
        compiler_params=pltpu.CompilerParams(
            dimension_semantics=("parallel",)),
        cost_estimate=cost,
    )(obs_p, h_pad, prep["w"], prep["bias"])

    # mean/log_std come from the *carried* tail (pass-through + squash).  The
    # tanh squash is left to XLA (fuses with the logical slice) instead of
    # paying a (Bp,128) f32 in+out kernel DMA for 4 useful columns.
    mean = tail_pad[:B, :A]
    old_log_std = tail_pad[:B, A:2 * A]
    log_std = LOG_STD_MIN + 0.5 * (LOG_STD_MAX - LOG_STD_MIN) * (
        jnp.tanh(old_log_std) + 1.0)

    return mean, log_std, (newh_pad, new_tail_pad)


def actor_slow_in_parallel_forward(obs, hidden_activations, prep):
    """Module-shaped wrapper (logical shapes in / out).  Prefer forward_padded
    + init_padded_activations in a rollout loop to avoid per-step pad/slice."""
    B = obs.shape[0]
    carry = pad_activations(hidden_activations, B, prep)
    mean, log_std, new_carry = forward_padded(obs, carry, prep)
    new_hidden, (new_mean, new_log_std) = unpack_padded_activations(new_carry, B, prep)
    return mean, log_std, [new_hidden, (new_mean, new_log_std)]


def init_params(key, obs_dim, hidden_dim, n_hidden_layers, action_dim):
    """Deterministic replica of ActorSlowInParallel.layer_init (kaiming_normal blocks)."""
    overall = hidden_dim * (n_hidden_layers + 1)
    input_dim = obs_dim + overall
    output_dim = overall + 2 * action_dim
    in_dim = [0, obs_dim] + [obs_dim + hidden_dim * i
                             for i in range(1, n_hidden_layers + 2)]
    out_dim = [0] + [hidden_dim * i for i in range(1, n_hidden_layers + 2)] + [output_dim]

    W = np.zeros((output_dim, input_dim), np.float32)
    M = np.zeros((output_dim, input_dim), np.float32)
    for i in range(n_hidden_layers + 2):
        r0, r1 = out_dim[i], out_dim[i + 1]
        c0, c1 = in_dim[i], in_dim[i + 1]
        fan_in = c1 - c0
        key, sub = jax.random.split(key)
        blk = jax.random.normal(sub, (r1 - r0, c1 - c0), jnp.float32) * np.sqrt(2.0 / fan_in)
        W[r0:r1, c0:c1] = np.asarray(blk)
        M[r0:r1, c0:c1] = 1.0
    b = np.zeros((output_dim,), np.float32)
    return jnp.asarray(W), jnp.asarray(b), jnp.asarray(M)


def _bf16_round(x):
    return np.asarray(jnp.asarray(np.asarray(x), jnp.float32)
                      .astype(jnp.bfloat16).astype(jnp.float32))


def _reference_forward(obs, hidden_activations, weight, bias, mask,
                       hidden_total, action_dim):
    """NumPy reference mirroring the PyTorch forward with the kernel's operand
    precision (bf16 matmul operands, f32 accumulate, bf16 new_hidden carry)."""
    h_prev = np.asarray(hidden_activations[0], np.float32)
    old_mean, old_log_std = hidden_activations[-1]
    old_mean = np.asarray(old_mean, np.float32)
    old_log_std = np.asarray(old_log_std, np.float32)

    x = np.concatenate([np.asarray(obs, np.float32), h_prev], axis=1)
    w = np.asarray(weight) * np.asarray(mask)
    new_x = _bf16_round(x) @ _bf16_round(w).T + np.asarray(bias)
    new_hidden = _bf16_round(np.maximum(new_x[:, :-2 * action_dim], 0.0))
    new_mean = new_x[:, -2 * action_dim:-action_dim]
    new_log_std = new_x[:, -action_dim:]
    ls = np.tanh(old_log_std)
    ls = LOG_STD_MIN + 0.5 * (LOG_STD_MAX - LOG_STD_MIN) * (ls + 1.0)
    return old_mean, ls, [new_hidden, (new_mean, new_log_std)]


if __name__ == "__main__":
    key = jax.random.PRNGKey(0)

    # Small shapes consistent with the module:
    B = 2
    obs_dim = 16
    hidden_dim = 32
    n_hidden_layers = 2
    action_dim = 4
    overall = hidden_dim * (n_hidden_layers + 1)   # 96

    k_w, k_obs, k_h, k_m, k_ls, k_seq = jax.random.split(key, 6)
    W, b, M = init_params(k_w, obs_dim, hidden_dim, n_hidden_layers, action_dim)

    # One-time parameter prep (mask folding, transpose, stack, pad, bf16 cast).
    prep = prepare_params(W, b, M, obs_dim, overall, action_dim)

    # ---- single step through the module-shaped wrapper ----
    obs = jax.random.normal(k_obs, (B, obs_dim), jnp.float32)
    h0 = jax.random.normal(k_h, (B, overall), jnp.float32)
    old_mean = jax.random.normal(k_m, (B, action_dim), jnp.float32)
    old_log_std = jax.random.normal(k_ls, (B, action_dim), jnp.float32)
    hidden_acts = [h0, (old_mean, old_log_std)]

    mean, log_std, new_acts = actor_slow_in_parallel_forward(obs, hidden_acts, prep)
    jax.block_until_ready((mean, log_std, new_acts[0], new_acts[1][0], new_acts[1][1]))

    r_mean, r_ls, r_acts = _reference_forward(obs, hidden_acts, W, b, M,
                                              overall, action_dim)
    np.testing.assert_allclose(np.asarray(mean), r_mean, atol=1e-5, rtol=1e-5)
    np.testing.assert_allclose(np.asarray(log_std), r_ls, atol=1e-4, rtol=1e-4)
    np.testing.assert_allclose(np.asarray(new_acts[0]), r_acts[0], atol=1e-2, rtol=1e-2)
    np.testing.assert_allclose(np.asarray(new_acts[1][0]), r_acts[1][0], atol=1e-3, rtol=1e-3)
    np.testing.assert_allclose(np.asarray(new_acts[1][1]), r_acts[1][1], atol=1e-3, rtol=1e-3)

    # ---- multi-step rollout: carry stays in the padded kernel layout ----
    steps = 3
    obs_seq = jax.random.normal(k_seq, (steps, B, obs_dim), jnp.float32)
    carry = init_padded_activations(B, prep)
    ref_carry = [np.zeros((B, overall), np.float32),
                 (np.zeros((B, action_dim), np.float32),
                  np.zeros((B, action_dim), np.float32))]
    for t in range(steps):
        mean, log_std, carry = forward_padded(obs_seq[t], carry, prep)
        r_mean, r_ls, ref_carry = _reference_forward(obs_seq[t], ref_carry, W, b, M,
                                                     overall, action_dim)
        np.testing.assert_allclose(np.asarray(mean), r_mean, atol=1e-2, rtol=1e-2)
        np.testing.assert_allclose(np.asarray(log_std), r_ls, atol=1e-2, rtol=1e-2)
    # Slice the carry to logical shapes only at the end (the consumer).
    new_h, (new_m, new_s) = unpack_padded_activations(carry, B, prep)
    jax.block_until_ready((new_h, new_m, new_s))
    np.testing.assert_allclose(np.asarray(new_h), ref_carry[0], atol=1e-2, rtol=1e-2)
    np.testing.assert_allclose(np.asarray(new_m), ref_carry[1][0], atol=1e-2, rtol=1e-2)
    np.testing.assert_allclose(np.asarray(new_s), ref_carry[1][1], atol=1e-2, rtol=1e-2)

    print("KERNEL_OK")
</pallas_src>

<mosaic_0001>
module attributes {stable_mosaic.version = 11 : i64} {
  func.func @actor_parallel_kernel(%arg0: i32, %arg1: memref<16x128xbf16, #tpu.memory_space<vmem>>, %arg2: memref<16x128xbf16, #tpu.memory_space<vmem>>, %arg3: memref<256x256xbf16, #tpu.memory_space<vmem>>, %arg4: memref<1x256xf32, #tpu.memory_space<vmem>>, %arg5: memref<16x128xbf16, #tpu.memory_space<vmem>>, %arg6: memref<16x128xf32, #tpu.memory_space<vmem>>, %arg7: memref<16x256xbf16, #tpu.memory_space<vmem>>) attributes {dimension_semantics = [#tpu.dimension_semantics<parallel>], iteration_bounds = array<i64: 1>, scalar_prefetch = 0 : i64, scratch_operands = 1 : i64, tpu.core_type = #tpu.core_type<tc>, window_params = [{transform_indices = @transform_0, window_bounds = array<i64: 16, 128>}, {transform_indices = @transform_1, window_bounds = array<i64: 16, 128>}, {pipeline_mode = #tpu.pipeline_mode<synchronous>, transform_indices = @transform_2, window_bounds = array<i64: 256, 256>}, {pipeline_mode = #tpu.pipeline_mode<synchronous>, transform_indices = @transform_3, window_bounds = array<i64: 1, 256>}, {transform_indices = @transform_4, window_bounds = array<i64: 16, 128>}, {transform_indices = @transform_5, window_bounds = array<i64: 16, 128>}]} {
    %c0 = arith.constant 0 : index
    %c0_0 = arith.constant 0 : index
    %0 = vector.load %arg1[%c0, %c0_0] : memref<16x128xbf16, #tpu.memory_space<vmem>>, vector<16x128xbf16>
    %c0_1 = arith.constant 0 : index
    %c0_2 = arith.constant 0 : index
    %1 = vector.load %arg7[%c0_1, %c0_2] : memref<16x256xbf16, #tpu.memory_space<vmem>>, vector<16x128xbf16>
    tpu.vector_store %arg7[%c0_1, %c0_2], %0 {strides = array<i32>} : memref<16x256xbf16, #tpu.memory_space<vmem>>, vector<16x128xbf16>,
    %c0_3 = arith.constant 0 : index
    %c0_4 = arith.constant 0 : index
    %2 = vector.load %arg2[%c0_3, %c0_4] : memref<16x128xbf16, #tpu.memory_space<vmem>>, vector<16x128xbf16>
    %c0_5 = arith.constant 0 : index
    %c128 = arith.constant 128 : index
    %3 = vector.load %arg7[%c0_5, %c128] : memref<16x256xbf16, #tpu.memory_space<vmem>>, vector<16x128xbf16>
    tpu.vector_store %arg7[%c0_5, %c128], %2 {strides = array<i32>} : memref<16x256xbf16, #tpu.memory_space<vmem>>, vector<16x128xbf16>,
    %c0_6 = arith.constant 0 : index
    %c0_7 = arith.constant 0 : index
    %4 = vector.load %arg7[%c0_6, %c0_7] : memref<16x256xbf16, #tpu.memory_space<vmem>>, vector<16x256xbf16>
    %c0_8 = arith.constant 0 : index
    %c0_9 = arith.constant 0 : index
    %5 = vector.load %arg3[%c0_8, %c0_9] : memref<256x256xbf16, #tpu.memory_space<vmem>>, vector<256x256xbf16>
    %cst = arith.constant dense<0.000000e+00> : vector<16x256xf32>
    %6 = tpu.matmul %4, %5, %cst {dimension_numbers = #tpu.dot_dimension_numbers<[1], [0], [0], [1], [0, 0, 1, 1], [], []>} : vector<16x256xbf16>, vector<256x256xbf16>, vector<16x256xf32> -> vector<16x256xf32>
    %c0_10 = arith.constant 0 : index
    %c0_11 = arith.constant 0 : index
    %7 = vector.load %arg4[%c0_10, %c0_11] : memref<1x256xf32, #tpu.memory_space<vmem>>, vector<1x256xf32>
    %8 = vector.broadcast %7 : vector<1x256xf32> to vector<16x256xf32>
    %9 = arith.addf %6, %8 : vector<16x256xf32>
    %10 = vector.extract_strided_slice %9 {offsets = [0, 0], sizes = [16, 128], strides = [1, 1]} : vector<16x256xf32> to vector<16x128xf32>
    %cst_12 = arith.constant 0.000000e+00 : f32
    %11 = vector.broadcast %cst_12 : f32 to vector<16x128xf32>
    %12 = arith.maximumf %10, %11 : vector<16x128xf32>
    %13 = arith.truncf %12 : vector<16x128xf32> to vector<16x128xbf16>
    %c0_13 = arith.constant 0 : index
    %c0_14 = arith.constant 0 : index
    %14 = vector.load %arg5[%c0_13, %c0_14] : memref<16x128xbf16, #tpu.memory_space<vmem>>, vector<16x128xbf16>
    tpu.vector_store %arg5[%c0_13, %c0_14], %13 {strides = array<i32>} : memref<16x128xbf16, #tpu.memory_space<vmem>>, vector<16x128xbf16>,
    %15 = vector.extract_strided_slice %9 {offsets = [0, 128], sizes = [16, 128], strides = [1, 1]} : vector<16x256xf32> to vector<16x128xf32>
    %c0_15 = arith.constant 0 : index
    %c0_16 = arith.constant 0 : index
    %16 = vector.load %arg6[%c0_15, %c0_16] : memref<16x128xf32, #tpu.memory_space<vmem>>, vector<16x128xf32>
    tpu.vector_store %arg6[%c0_15, %c0_16], %15 {strides = array<i32>} : memref<16x128xf32, #tpu.memory_space<vmem>>, vector<16x128xf32>,
    return
  }
  func.func @transform_0(%arg0: i32) -> (i32, i32) {
    %c0_i32 = arith.constant 0 : i32
    %c0_i32_0 = arith.constant 0 : i32
    return %arg0, %c0_i32 : i32, i32
  }
  func.func @transform_1(%arg0: i32) -> (i32, i32) {
    %c0_i32 = arith.constant 0 : i32
    %c0_i32_0 = arith.constant 0 : i32
    return %arg0, %c0_i32 : i32, i32
  }
  func.func @transform_2(%arg0: i32) -> (i32, i32) {
    %c0_i32 = arith.constant 0 : i32
    %c0_i32_0 = arith.constant 0 : i32
    %c0_i32_1 = arith.constant 0 : i32
    return %c0_i32, %c0_i32_0 : i32, i32
  }
  func.func @transform_3(%arg0: i32) -> (i32, i32) {
    %c0_i32 = arith.constant 0 : i32
    %c0_i32_0 = arith.constant 0 : i32
    %c0_i32_1 = arith.constant 0 : i32
    return %c0_i32, %c0_i32_0 : i32, i32
  }
  func.func @transform_4(%arg0: i32) -> (i32, i32) {
    %c0_i32 = arith.constant 0 : i32
    %c0_i32_0 = arith.constant 0 : i32
    return %arg0, %c0_i32 : i32, i32
  }
  func.func @transform_5(%arg0: i32) -> (i32, i32) {
    %c0_i32 = arith.constant 0 : i32
    %c0_i32_0 = arith.constant 0 : i32
    return %arg0, %c0_i32 : i32, i32
  }
}

</mosaic_0001>

<llo_original>
// kernel: tpu_custom_call.1
$region0: #{tpu_custom_call.1}
  #allocation0 [shape = 'u32[]', space=smem, size = 0x4, offset = 0x4, fixed_abs, tag = 'smem constant byte address 0x4 - core index']
  #allocation1 [shape = 'u32[144,128]{1,0:T(1,128)}', space=vmem, size = 0x12000, scoped, tag = 'internal scratch']
  #allocation2 [shape = 'bf16[16,256]{1,0:T(8,128)(2,1)}', space=vmem, size = 0x2000, scoped, tag = 'scratch operand']
  %s0 = inlined_call_operand.hbm [shape: bf16[16,128], index: 0, kind: input, shape index: {}]
  %s1 = inlined_call_operand.hbm [shape: bf16[16,128], index: 1, kind: input, shape index: {}]
  %s2 = inlined_call_operand.hbm [shape: bf16[256,256], index: 2, kind: input, shape index: {}]
  %s3 = inlined_call_operand.vmem [shape: f32[1,256], index: 3, kind: input, shape index: {}]
  %s4 = inlined_call_operand.hbm [shape: bf16[16,128], index: 4, kind: output, shape index: {0}]
  %s5 = inlined_call_operand.hbm [shape: f32[16,128], index: 5, kind: output, shape index: {1}]
  %6 = xla_tuple %s4, %s5
  %s7 = sld [smem:[#allocation0]]
  $region46: #{tpu_custom_call.1} parent=0
    _
  %s9 = ssub.s32 1, %s7
  %s10 = scalar_select 0, %s9, %s7
  $region1: #{tpu_custom_call.1} parent=0
    #allocation3 [shape = 'u8[4096]{0}', space=vmem, size = 0x1000, scoped, tag = 'input window, operand 0, single buffered']
    #allocation4 [shape = 's32[1]{0}', space=sflag, size = 0x4, scoped, tag = 'scoped memory for tpu_custom_call.1']
    #allocation5 [shape = 's32[1]{0}', space=sflag, size = 0x4, scoped, tag = 'scoped memory for tpu_custom_call.1']
    #allocation6 [shape = 'u8[4096]{0}', space=vmem, size = 0x1000, scoped, tag = 'input window, operand 1, single buffered']
    #allocation7 [shape = 's32[1]{0}', space=sflag, size = 0x4, scoped, tag = 'scoped memory for tpu_custom_call.1']
    #allocation8 [shape = 'u8[131072]{0}', space=vmem, size = 0x20000, scoped, tag = 'input window, operand 2, single buffered']
    #allocation9 [shape = 'u8[4096]{0}', space=vmem, size = 0x1000, scoped, tag = 'output window, operand 0, single buffered']
    #allocation10 [shape = 'u8[8192]{0}', space=vmem, size = 0x2000, scoped, tag = 'output window, operand 1, single buffered']
    #allocation11 [shape = 's32[1]{0}', space=sflag, size = 0x4, scoped, tag = 'scoped memory for tpu_custom_call.1']
    %11 = vsyncpa [#allocation4], 0
    %12 = vsyncpa [#allocation7], 0
    %13 = vsyncpa [#allocation5], 0
    %14 = vsyncpa [#allocation11], 0
    // Predicated region
    $region2: #{tpu_custom_call.1} parent=1 // pred_check
      _
    $region3: #{tpu_custom_call.1} parent=1 // pred_check_branch
      %16 = sbr.rel (0) target = $region5
    $region4: #{tpu_custom_call.1} parent=1 // pred_region
      %s18 = ssub.s32 128, 128
      %19 = vsyncadd [#allocation4], %s18
      %s20 = sshll.u32 [#allocation3], 4
      %s21 = int_to_ptr.vmem [resolvable:$true] %s20
      %26 = dma.hbm_to_vmem [thread:$0]  %s0, 128, %s21, [#allocation4], 64, 64, 4
    $region5: #{tpu_custom_call.1} parent=1 // pred_fallthru
      _
    // Predicated region
    $region6: #{tpu_custom_call.1} parent=1 // pred_check
      _
    $region7: #{tpu_custom_call.1} parent=1 // pred_check_branch
      %28 = sbr.rel (0) target = $region9
    $region8: #{tpu_custom_call.1} parent=1 // pred_region
      %s30 = ssub.s32 128, 128
      %31 = vsyncadd [#allocation7], %s30
      %s32 = sshll.u32 [#allocation6], 4
      %s33 = int_to_ptr.vmem [resolvable:$true] %s32
      %38 = dma.hbm_to_vmem [thread:$0]  %s1, 128, %s33, [#allocation7], 64, 64, 4
    $region9: #{tpu_custom_call.1} parent=1 // pred_fallthru
      _
    // Predicated region
    $region10: #{tpu_custom_call.1} parent=1 // pred_check
      _
    $region11: #{tpu_custom_call.1} parent=1 // pred_check_branch
      %40 = sbr.rel (0) target = $region13
    $region12: #{tpu_custom_call.1} parent=1 // pred_region
      %s42 = ssub.s32 4096, 4096
      %43 = vsyncadd [#allocation7], %s42
      %s44 = sshll.u32 [#allocation8], 4
      %s45 = int_to_ptr.vmem [resolvable:$true] %s44
      %50 = dma.hbm_to_vmem [thread:$0]  %s2, 4096, %s45, [#allocation7], 128, 128, 8
    $region13: #{tpu_custom_call.1} parent=1 // pred_fallthru
      _
    // Predicated region
    $region14: #{tpu_custom_call.1} parent=1 // pred_check
      _
    $region15: #{tpu_custom_call.1} parent=1 // pred_check_branch
      %52 = sbr.rel (0) target = $region17
    $region16: #{tpu_custom_call.1} parent=1 // pred_region
      _
    $region17: #{tpu_custom_call.1} parent=1 // pred_fallthru
      _
    // Predicated region
    $region18: #{tpu_custom_call.1} parent=1 // pred_check
      _
    $region19: #{tpu_custom_call.1} parent=1 // pred_check_branch
      %54 = sbr.rel (0) target = $region21
    $region20: #{tpu_custom_call.1} parent=1 // pred_region
      %55 = dma.done [#allocation4], 128
    $region21: #{tpu_custom_call.1} parent=1 // pred_fallthru
      _
    // Predicated region
    $region22: #{tpu_custom_call.1} parent=1 // pred_check
      _
    $region23: #{tpu_custom_call.1} parent=1 // pred_check_branch
      %57 = sbr.rel (0) target = $region25
    $region24: #{tpu_custom_call.1} parent=1 // pred_region
      %58 = dma.done [#allocation7], 128
    $region25: #{tpu_custom_call.1} parent=1 // pred_fallthru
      _
    // Predicated region
    $region26: #{tpu_custom_call.1} parent=1 // pred_check
      _
    $region27: #{tpu_custom_call.1} parent=1 // pred_check_branch
      %60 = sbr.rel (0) target = $region29
    $region28: #{tpu_custom_call.1} parent=1 // pred_region
      %61 = dma.done [#allocation7], 4096
    $region29: #{tpu_custom_call.1} parent=1 // pred_fallthru
      _
    %v62 = vld [vmem:[#allocation3] sm:$0xf]
    %v63 = vld [vmem:[#allocation3 + $0x4] sm:$0xf]
    %64 = vst [vmem:[#allocation2] sm:$0xf] %v62
    %65 = vst [vmem:[#allocation2 + $0x8] sm:$0xf] %v63
    %v66 = vld [vmem:[#allocation6] sm:$0xf]
    %v67 = vld [vmem:[#allocation6 + $0x4] sm:$0xf]
    %68 = vst [vmem:[#allocation2 + $0x4] sm:$0xf] %v66
    %69 = vst [vmem:[#allocation2 + $0xc] sm:$0xf] %v67
    %v70 = vld [vmem:[#allocation2] sm:$0xff]
    %v71 = vld [vmem:[#allocation2 + $0x8] sm:$0xff]
    %v72 = vld [vmem:[#allocation8] sm:$0xff]
    %v73 = vld [vmem:[#allocation8 + $0x8] sm:$0xff]
    %v74 = vld [vmem:[#allocation8 + $0x10] sm:$0xff]
    %v75 = vld [vmem:[#allocation8 + $0x18] sm:$0xff]
    %v76 = vld [vmem:[#allocation8 + $0x20] sm:$0xff]
    %v77 = vld [vmem:[#allocation8 + $0x28] sm:$0xff]
    %v78 = vld [vmem:[#allocation8 + $0x30] sm:$0xff]
    %v79 = vld [vmem:[#allocation8 + $0x38] sm:$0xff]
    %v80 = vld [vmem:[#allocation8 + $0x40] sm:$0xff]
    %v81 = vld [vmem:[#allocation8 + $0x48] sm:$0xff]
    %v82 = vld [vmem:[#allocation8 + $0x50] sm:$0xff]
    %v83 = vld [vmem:[#allocation8 + $0x58] sm:$0xff]
    %v84 = vld [vmem:[#allocation8 + $0x60] sm:$0xff]
    %v85 = vld [vmem:[#allocation8 + $0x68] sm:$0xff]
    %v86 = vld [vmem:[#allocation8 + $0x70] sm:$0xff]
    %v87 = vld [vmem:[#allocation8 + $0x78] sm:$0xff]
    %v88 = vld [vmem:[#allocation8 + $0x80] sm:$0xff]
    %v89 = vld [vmem:[#allocation8 + $0x88] sm:$0xff]
    %v90 = vld [vmem:[#allocation8 + $0x90] sm:$0xff]
    %v91 = vld [vmem:[#allocation8 + $0x98] sm:$0xff]
    %v92 = vld [vmem:[#allocation8 + $0xa0] sm:$0xff]
    %v93 = vld [vmem:[#allocation8 + $0xa8] sm:$0xff]
    %v94 = vld [vmem:[#allocation8 + $0xb0] sm:$0xff]
    %v95 = vld [vmem:[#allocation8 + $0xb8] sm:$0xff]
    %v96 = vld [vmem:[#allocation8 + $0xc0] sm:$0xff]
    %v97 = vld [vmem:[#allocation8 + $0xc8] sm:$0xff]
    %v98 = vld [vmem:[#allocation8 + $0xd0] sm:$0xff]
    %v99 = vld [vmem:[#allocation8 + $0xd8] sm:$0xff]
    %v100 = vld [vmem:[#allocation8 + $0xe0] sm:$0xff]
    %v101 = vld [vmem:[#allocation8 + $0xe8] sm:$0xff]
    %v102 = vld [vmem:[#allocation8 + $0xf0] sm:$0xff]
    %v103 = vld [vmem:[#allocation8 + $0xf8] sm:$0xff]
    %v104 = vld [vmem:[%s3] sm:$0x3]
    %v106 = vlaneseq
    %v107 = vshrl.u32 %v106, 7
    %v108 = vsub.s32 0, %v107
    %v109 = vrot.slane %v104, %v108
    %v110 = vlaneseq
    %v111 = vshrl.u32 %v110, 7
    %v112 = vsub.s32 1, %v111
    %v113 = vrot.slane %v104, %v112
    %v118 = vunpack.c.l.b16 %v70
    %v119 = vunpack.c.h.b16 %v70
    %v120 = vunpack.c.l.b16 %v71
    %v121 = vunpack.c.h.b16 %v71
    %v122 = vpack.c.b16 %v120, %v118
    %v123 = vpack.c.b16 %v121, %v119
    %v158 = vunpack.c.l.b16 %v72
    %v159 = vunpack.c.h.b16 %v72
    %v160 = vunpack.c.l.b16 %v73
    %v161 = vunpack.c.h.b16 %v73
    %v162 = vunpack.c.l.b16 %v74
    %v163 = vunpack.c.h.b16 %v74
    %v164 = vunpack.c.l.b16 %v75
    %v165 = vunpack.c.h.b16 %v75
    %v166 = vunpack.c.l.b16 %v76
    %v167 = vunpack.c.h.b16 %v76
    %v168 = vunpack.c.l.b16 %v77
    %v169 = vunpack.c.h.b16 %v77
    %v170 = vunpack.c.l.b16 %v78
    %v171 = vunpack.c.h.b16 %v78
    %v172 = vunpack.c.l.b16 %v79
    %v173 = vunpack.c.h.b16 %v79
    %v174 = vunpack.c.l.b16 %v80
    %v175 = vunpack.c.h.b16 %v80
    %v176 = vunpack.c.l.b16 %v81
    %v177 = vunpack.c.h.b16 %v81
    %v178 = vunpack.c.l.b16 %v82
    %v179 = vunpack.c.h.b16 %v82
    %v180 = vunpack.c.l.b16 %v83
    %v181 = vunpack.c.h.b16 %v83
    %v182 = vunpack.c.l.b16 %v84
    %v183 = vunpack.c.h.b16 %v84
    %v184 = vunpack.c.l.b16 %v85
    %v185 = vunpack.c.h.b16 %v85
    %v186 = vunpack.c.l.b16 %v86
    %v187 = vunpack.c.h.b16 %v86
    %v188 = vunpack.c.l.b16 %v87
    %v189 = vunpack.c.h.b16 %v87
    %v190 = vunpack.c.l.b16 %v88
    %v191 = vunpack.c.h.b16 %v88
    %v192 = vunpack.c.l.b16 %v89
    %v193 = vunpack.c.h.b16 %v89
    %v194 = vunpack.c.l.b16 %v90
    %v195 = vunpack.c.h.b16 %v90
    %v196 = vunpack.c.l.b16 %v91
    %v197 = vunpack.c.h.b16 %v91
    %v198 = vunpack.c.l.b16 %v92
    %v199 = vunpack.c.h.b16 %v92
    %v200 = vunpack.c.l.b16 %v93
    %v201 = vunpack.c.h.b16 %v93
    %v202 = vunpack.c.l.b16 %v94
    %v203 = vunpack.c.h.b16 %v94
    %v204 = vunpack.c.l.b16 %v95
    %v205 = vunpack.c.h.b16 %v95
    %v206 = vunpack.c.l.b16 %v96
    %v207 = vunpack.c.h.b16 %v96
    %v208 = vunpack.c.l.b16 %v97
    %v209 = vunpack.c.h.b16 %v97
    %v210 = vunpack.c.l.b16 %v98
    %v211 = vunpack.c.h.b16 %v98
    %v212 = vunpack.c.l.b16 %v99
    %v213 = vunpack.c.h.b16 %v99
    %v214 = vunpack.c.l.b16 %v100
    %v215 = vunpack.c.h.b16 %v100
    %v216 = vunpack.c.l.b16 %v101
    %v217 = vunpack.c.h.b16 %v101
    %v218 = vunpack.c.l.b16 %v102
    %v219 = vunpack.c.h.b16 %v102
    %v220 = vunpack.c.l.b16 %v103
    %v221 = vunpack.c.h.b16 %v103
    %v222 = vpack.c.b16 %v160, %v158
    %v223 = vpack.c.b16 %v161, %v159
    %v224 = vpack.c.b16 %v164, %v162
    %v225 = vpack.c.b16 %v165, %v163
    %v226 = vpack.c.b16 %v168, %v166
    %v227 = vpack.c.b16 %v169, %v167
    %v228 = vpack.c.b16 %v172, %v170
    %v229 = vpack.c.b16 %v173, %v171
    %v230 = vpack.c.b16 %v176, %v174
    %v231 = vpack.c.b16 %v177, %v175
    %v232 = vpack.c.b16 %v180, %v178
    %v233 = vpack.c.b16 %v181, %v179
    %v234 = vpack.c.b16 %v184, %v182
    %v235 = vpack.c.b16 %v185, %v183
    %v236 = vpack.c.b16 %v188, %v186
    %v237 = vpack.c.b16 %v189, %v187
    %v238 = vpack.c.b16 %v192, %v190
    %v239 = vpack.c.b16 %v193, %v191
    %v240 = vpack.c.b16 %v196, %v194
    %v241 = vpack.c.b16 %v197, %v195
    %v242 = vpack.c.b16 %v200, %v198
    %v243 = vpack.c.b16 %v201, %v199
    %v244 = vpack.c.b16 %v204, %v202
    %v245 = vpack.c.b16 %v205, %v203
    %v246 = vpack.c.b16 %v208, %v206
    %v247 = vpack.c.b16 %v209, %v207
    %v248 = vpack.c.b16 %v212, %v210
    %v249 = vpack.c.b16 %v213, %v211
    %v250 = vpack.c.b16 %v216, %v214
    %v251 = vpack.c.b16 %v217, %v215
    %v252 = vpack.c.b16 %v220, %v218
    %v253 = vpack.c.b16 %v221, %v219
    %286 = vmatprep.subr.bf16.mxu0 %v237
    %287 = vmatpush1.bf16.msra.mxu0 %v236
    %288 = vmatprep.subr.bf16.mxu0 %v235
    %289 = vmatpush1.bf16.msra.mxu0 %v234
    %290 = vmatprep.subr.bf16.mxu0 %v233
    %291 = vmatpush1.bf16.msra.mxu0 %v232
    %292 = vmatprep.subr.bf16.mxu0 %v231
    %293 = vmatpush1.bf16.msra.mxu0 %v230
    %294 = vmatprep.subr.bf16.mxu0 %v229
    %295 = vmatpush1.bf16.msra.mxu0 %v228
    %296 = vmatprep.subr.bf16.mxu0 %v227
    %297 = vmatpush1.bf16.msra.mxu0 %v226
    %298 = vmatprep.subr.bf16.mxu0 %v225
    %299 = vmatpush1.bf16.msra.mxu0 %v224
    %300 = vmatprep.subr.bf16.mxu0 %v223
    %301 = vmatpush1.bf16.msra.mxu0 %v222
    %302 = vmatprep.subr.bf16.mxu0 %v253
    %303 = vmatpush2.bf16.msra.mxu0 %v252
    %304 = vmatprep.subr.bf16.mxu0 %v251
    %305 = vmatpush2.bf16.msra.mxu0 %v250
    %306 = vmatprep.subr.bf16.mxu0 %v249
    %307 = vmatpush2.bf16.msra.mxu0 %v248
    %308 = vmatprep.subr.bf16.mxu0 %v247
    %309 = vmatpush2.bf16.msra.mxu0 %v246
    %310 = vmatprep.subr.bf16.mxu0 %v245
    %311 = vmatpush2.bf16.msra.mxu0 %v244
    %312 = vmatprep.subr.bf16.mxu0 %v243
    %313 = vmatpush2.bf16.msra.mxu0 %v242
    %314 = vmatprep.subr.bf16.mxu0 %v241
    %315 = vmatpush2.bf16.msra.mxu0 %v240
    %316 = vmatprep.subr.bf16.mxu0 %v239
    %317 = vmatpush2.bf16.msra.mxu0 %v238
    %318 = vmatprep.mubr.bf16.mxu0 %v123
    %319 = vmatmul.mubr.bf16.gmra.mxu0 %v122
    %v320 = vpop.f32.mrf.mxu0
    %v321 = vadd.f32 %v109, %v320
    %v322 = vpop.f32.mrf.mxu0
    %v323 = vadd.f32 %v113, %v322
    %v324 = vpop.f32.mrf.mxu0
    %v325 = vadd.f32 %v109, %v324
    %v326 = vpop.f32.mrf.mxu0
    %v327 = vadd.f32 %v113, %v326
    %328 = vdwg.mxu0
    %v329 = vmax.f32 %v321, 0.0
    %v330 = vmax.f32 %v325, 0.0
    %v331 = vpack.c.bf16 %v330, %v329
    %v333 = vunpack.c.l.b16 %v331
    %v334 = vunpack.c.h.b16 %v331
    %v335 = vpack.c.b16 %v333, %v333
    %v336 = vpack.c.b16 %v334, %v334
    %339 = vst [vmem:[#allocation9] sm:$0xf] %v335
    %340 = vst [vmem:[#allocation9 + $0x4] sm:$0xf] %v336
    %341 = vst [vmem:[#allocation10] sm:$0xff] %v323
    %342 = vst [vmem:[#allocation10 + $0x8] sm:$0xff] %v327
    // Predicated region
    $region30: #{tpu_custom_call.1} parent=1 // pred_check
      _
    $region31: #{tpu_custom_call.1} parent=1 // pred_check_branch
      %344 = sbr.rel (0) target = $region33
    $region32: #{tpu_custom_call.1} parent=1 // pred_region
      %s346 = ssub.s32 128, 128
      %347 = vsyncadd [#allocation5], %s346
      %s348 = sshll.u32 [#allocation9], 4
      %s349 = int_to_ptr.vmem [resolvable:$true] %s348
      %354 = dma.vmem_to_hbm [thread:$0]  %s349, 128, %s4, [#allocation5], 64, 64, 4
    $region33: #{tpu_custom_call.1} parent=1 // pred_fallthru
      _
    // Predicated region
    $region34: #{tpu_custom_call.1} parent=1 // pred_check
      _
    $region35: #{tpu_custom_call.1} parent=1 // pred_check_branch
      %356 = sbr.rel (0) target = $region37
    $region36: #{tpu_custom_call.1} parent=1 // pred_region
      %s358 = ssub.s32 256, 256
      %359 = vsyncadd [#allocation11], %s358
      %s360 = sshll.u32 [#allocation10], 4
      %s361 = int_to_ptr.vmem [resolvable:$true] %s360
      %366 = dma.vmem_to_hbm [thread:$0]  %s361, 256, %s5, [#allocation11], 128, 128, 8
    $region37: #{tpu_custom_call.1} parent=1 // pred_fallthru
      _
    // Predicated region
    $region38: #{tpu_custom_call.1} parent=1 // pred_check
      _
    $region39: #{tpu_custom_call.1} parent=1 // pred_check_branch
      %368 = sbr.rel (0) target = $region41
    $region40: #{tpu_custom_call.1} parent=1 // pred_region
      %369 = dma.done [#allocation5], 128
    $region41: #{tpu_custom_call.1} parent=1 // pred_fallthru
      _
    // Predicated region
    $region42: #{tpu_custom_call.1} parent=1 // pred_check
      _
    $region43: #{tpu_custom_call.1} parent=1 // pred_check_branch
      %371 = sbr.rel (0) target = $region45
    $region44: #{tpu_custom_call.1} parent=1 // pred_region
      %372 = dma.done [#allocation11], 256
    $region45: #{tpu_custom_call.1} parent=1 // pred_fallthru
      _
    %373 = vsyncpa [#allocation4], 1
    %374 = vsyncpa [#allocation7], 1
    %375 = vsyncpa [#allocation5], 1
    %376 = vsyncpa [#allocation11], 1

</llo_original>
